<compile_context>
chip_gen: v5e
topology: v5e:2x2
jax: 0.10.0
libtpu: 0.0.40
codegen_flags: <defaults>
</compile_context>

<pallas_src>
import functools

import jax
import jax.numpy as jnp
from jax.experimental import pallas as pl
from jax.experimental.pallas import tpu as pltpu


def _round_up(x, m):
    return (x + m - 1) // m * m


def slp_kernel(x_ref, w_ref, b_ref, o_ref, *, num_logits):
    # In-kernel cast to bf16 (MXU-native); x was streamed in native dtype.
    x = x_ref[...].astype(jnp.bfloat16)
    # MXU matmul (bf16 in, f32 accumulate) on the lane-dense 128-wide layout.
    logits = jnp.dot(x, w_ref[...],
                     preferred_element_type=jnp.float32) + b_ref[...]
    # Numerically stable log_softmax; padded lanes carry -inf bias -> exp=0.
    m = jnp.max(logits, axis=1, keepdims=True)            # XLU reduction
    z = logits - m
    lse = jnp.log(jnp.sum(jnp.exp(z), axis=1, keepdims=True))  # EUP exp/log
    # Write only the real logit lanes (masked stores; 40 B/row instead of 512).
    o_ref[...] = (z - lse)[:, :num_logits].astype(o_ref.dtype)


@functools.partial(jax.jit, static_argnames=("block_b",))
def slp_forward(x, weight, bias, *, block_b=2048):
    """x: any shape whose trailing dims flatten to input_size (like torch .view).
    weight: (logits, input_size) as in nn.Linear.  bias: (logits,)."""
    num_logits, input_size = weight.shape
    x2d = x.reshape(-1, input_size)                        # same as x.view(-1, input_size)
    batch = x2d.shape[0]

    # Lane-dense compute width: pad L -> multiple of 128 (weight/bias only).
    l_pad = _round_up(num_logits, 128)

    # One-time transposed + lane-padded weight (D, Lpad), bf16, VMEM-resident.
    w_p = jnp.zeros((input_size, l_pad), jnp.bfloat16)
    w_p = w_p.at[:, :num_logits].set(weight.T.astype(jnp.bfloat16))
    # Bias padded with -inf so padded lanes contribute exp(-inf)=0 to the lse.
    b_p = jnp.full((1, l_pad), -jnp.inf, jnp.float32)
    b_p = b_p.at[0, :num_logits].set(bias.astype(jnp.float32))

    # Batch tile: at least 2 grid steps when possible (v7x: both TensorCores),
    # sublane-aligned to 8, capped at block_b (VMEM budget, v5e 16 MiB default).
    tb = min(block_b, max(8, _round_up(pl.cdiv(batch, 2), 8)))
    grid = (pl.cdiv(batch, tb),)                           # ragged last tile OK

    out = pl.pallas_call(
        functools.partial(slp_kernel, num_logits=num_logits),
        out_shape=jax.ShapeDtypeStruct((batch, num_logits), jnp.float32),
        grid_spec=pltpu.PrefetchScalarGridSpec(
            num_scalar_prefetch=0,
            grid=grid,
            in_specs=[
                pl.BlockSpec((tb, input_size), lambda i: (i, 0)),     # x streams
                pl.BlockSpec((input_size, l_pad), lambda i: (0, 0)),  # weight resident
                pl.BlockSpec((1, l_pad), lambda i: (0, 0)),           # bias resident
            ],
            # Last dim == full array dim (allowed even though < 128 lanes).
            out_specs=pl.BlockSpec((tb, num_logits), lambda i: (i, 0)),
        ),
        compiler_params=pltpu.CompilerParams(
            dimension_semantics=("parallel",),   # shard batch tiles across TCs (v7x)
        ),
        cost_estimate=pl.CostEstimate(
            flops=2 * batch * input_size * l_pad,
            transcendentals=batch * l_pad,
            bytes_accessed=(batch * input_size * x2d.dtype.itemsize   # x (native dtype)
                            + input_size * l_pad * 2                  # weight (bf16)
                            + l_pad * 4                               # bias
                            + batch * num_logits * 4),                # output (f32)
        ),
    )(x2d, w_p, b_p)

    return out


if __name__ == "__main__":
    # Small MNIST-like shapes: batch=8, 1 channel, 16x16 images -> input_size=256, logits=10.
    batch, chans, spatial = 8, 1, 16
    input_size = chans * spatial * spatial
    num_logits = 10

    key = jax.random.PRNGKey(0)
    kx, kw, kb = jax.random.split(key, 3)

    x = jax.random.normal(kx, (batch, chans, spatial, spatial), dtype=jnp.float32)

    # Deterministic nn.Linear-style init: U(-1/sqrt(fan_in), 1/sqrt(fan_in)).
    bound = 1.0 / jnp.sqrt(jnp.float32(input_size))
    weight = jax.random.uniform(kw, (num_logits, input_size),
                                minval=-bound, maxval=bound, dtype=jnp.float32)
    bias = jax.random.uniform(kb, (num_logits,),
                              minval=-bound, maxval=bound, dtype=jnp.float32)

    out = slp_forward(x, weight, bias)
    out = jax.block_until_ready(out)

    # Reference in plain JAX with the same bf16 rounding the kernel applies at the dot.
    xb = x.reshape(-1, input_size).astype(jnp.bfloat16).astype(jnp.float32)
    wb = weight.astype(jnp.bfloat16).astype(jnp.float32)
    ref = jax.nn.log_softmax(xb @ wb.T + bias, axis=1)
    assert out.shape == (batch, num_logits)
    assert jnp.allclose(out, ref, atol=2e-3, rtol=2e-3), (
        float(jnp.max(jnp.abs(out - ref))))

    # Sanity vs full-f32 math (bf16 matmul rounding only).
    ref_f32 = jax.nn.log_softmax(x.reshape(-1, input_size) @ weight.T + bias, axis=1)
    assert jnp.allclose(out, ref_f32, atol=5e-2, rtol=5e-2)

    print("KERNEL_OK")
</pallas_src>

<mosaic_0001>
module attributes {stable_mosaic.version = 11 : i64} {
  func.func @slp_kernel(%arg0: i32, %arg1: memref<8x256xf32, #tpu.memory_space<vmem>>, %arg2: memref<256x128xbf16, #tpu.memory_space<vmem>>, %arg3: memref<1x128xf32, #tpu.memory_space<vmem>>, %arg4: memref<8x10xf32, #tpu.memory_space<vmem>>) attributes {dimension_semantics = [#tpu.dimension_semantics<parallel>], iteration_bounds = array<i64: 1>, scalar_prefetch = 0 : i64, scratch_operands = 0 : i64, tpu.core_type = #tpu.core_type<tc>, window_params = [{transform_indices = @transform_0, window_bounds = array<i64: 8, 256>}, {pipeline_mode = #tpu.pipeline_mode<synchronous>, transform_indices = @transform_1, window_bounds = array<i64: 256, 128>}, {pipeline_mode = #tpu.pipeline_mode<synchronous>, transform_indices = @transform_2, window_bounds = array<i64: 1, 128>}, {transform_indices = @transform_3, window_bounds = array<i64: 8, 10>}]} {
    %c0 = arith.constant 0 : index
    %c0_0 = arith.constant 0 : index
    %0 = vector.load %arg1[%c0, %c0_0] : memref<8x256xf32, #tpu.memory_space<vmem>>, vector<8x256xf32>
    %1 = arith.truncf %0 : vector<8x256xf32> to vector<8x256xbf16>
    %c0_1 = arith.constant 0 : index
    %c0_2 = arith.constant 0 : index
    %2 = vector.load %arg2[%c0_1, %c0_2] : memref<256x128xbf16, #tpu.memory_space<vmem>>, vector<256x128xbf16>
    %cst = arith.constant dense<0.000000e+00> : vector<8x128xf32>
    %3 = tpu.matmul %1, %2, %cst {dimension_numbers = #tpu.dot_dimension_numbers<[1], [0], [0], [1], [0, 0, 1, 1], [], []>} : vector<8x256xbf16>, vector<256x128xbf16>, vector<8x128xf32> -> vector<8x128xf32>
    %c0_3 = arith.constant 0 : index
    %c0_4 = arith.constant 0 : index
    %4 = vector.load %arg3[%c0_3, %c0_4] : memref<1x128xf32, #tpu.memory_space<vmem>>, vector<1x128xf32>
    %5 = vector.broadcast %4 : vector<1x128xf32> to vector<8x128xf32>
    %6 = arith.addf %3, %5 : vector<8x128xf32>
    %cst_5 = arith.constant dense<0xFF800000> : vector<8xf32>
    %7 = vector.multi_reduction <maximumf>, %6, %cst_5 [1] : vector<8x128xf32> to vector<8xf32>
    %8 = vector.shape_cast %7 : vector<8xf32> to vector<8x1xf32>
    %9 = vector.broadcast %8 : vector<8x1xf32> to vector<8x128xf32>
    %10 = arith.subf %6, %9 : vector<8x128xf32>
    %11 = math.exp %10 : vector<8x128xf32>
    %cst_6 = arith.constant dense<0.000000e+00> : vector<8xf32>
    %12 = vector.multi_reduction <add>, %11, %cst_6 [1] : vector<8x128xf32> to vector<8xf32>
    %13 = vector.shape_cast %12 : vector<8xf32> to vector<8x1xf32>
    %14 = math.log %13 : vector<8x1xf32>
    %15 = vector.broadcast %14 : vector<8x1xf32> to vector<8x128xf32>
    %16 = arith.subf %10, %15 : vector<8x128xf32>
    %17 = vector.extract_strided_slice %16 {offsets = [0, 0], sizes = [8, 10], strides = [1, 1]} : vector<8x128xf32> to vector<8x10xf32>
    %c0_7 = arith.constant 0 : index
    %c0_8 = arith.constant 0 : index
    %18 = vector.load %arg4[%c0_7, %c0_8] : memref<8x10xf32, #tpu.memory_space<vmem>>, vector<8x10xf32>
    tpu.vector_store %arg4[%c0_7, %c0_8], %17 {strides = array<i32>} : memref<8x10xf32, #tpu.memory_space<vmem>>, vector<8x10xf32>,
    return
  }
  func.func @transform_0(%arg0: i32) -> (i32, i32) {
    %c0_i32 = arith.constant 0 : i32
    %c0_i32_0 = arith.constant 0 : i32
    return %arg0, %c0_i32 : i32, i32
  }
  func.func @transform_1(%arg0: i32) -> (i32, i32) {
    %c0_i32 = arith.constant 0 : i32
    %c0_i32_0 = arith.constant 0 : i32
    %c0_i32_1 = arith.constant 0 : i32
    return %c0_i32, %c0_i32_0 : i32, i32
  }
  func.func @transform_2(%arg0: i32) -> (i32, i32) {
    %c0_i32 = arith.constant 0 : i32
    %c0_i32_0 = arith.constant 0 : i32
    %c0_i32_1 = arith.constant 0 : i32
    return %c0_i32, %c0_i32_0 : i32, i32
  }
  func.func @transform_3(%arg0: i32) -> (i32, i32) {
    %c0_i32 = arith.constant 0 : i32
    %c0_i32_0 = arith.constant 0 : i32
    return %arg0, %c0_i32 : i32, i32
  }
}

</mosaic_0001>

<llo_original>
// kernel: slp_forward.1
$region0: #{slp_forward.1}
  #allocation0 [shape = 'u32[]', space=smem, size = 0x4, offset = 0x4, fixed_abs, tag = 'smem constant byte address 0x4 - core index']
  #allocation1 [shape = 'u32[72,128]{1,0:T(1,128)}', space=vmem, size = 0x9000, scoped, tag = 'internal scratch']
  %s0 = inlined_call_operand.vmem [shape: f32[8,256], index: 0, kind: input, shape index: {}]
  %s1 = inlined_call_operand.vmem [shape: bf16[256,128], index: 1, kind: input, shape index: {}]
  %s2 = inlined_call_operand.vmem [shape: f32[1,128], index: 2, kind: input, shape index: {}]
  %s3 = inlined_call_operand.hbm [shape: f32[8,10], index: 3, kind: output, shape index: {}]
  %s4 = sld [smem:[#allocation0]]
  $region22: #{slp_forward.1} parent=0
    _
  %s6 = ssub.s32 1, %s4
  %s7 = scalar_select 0, %s6, %s4
  $region1: #{slp_forward.1} parent=0
    #allocation2 [shape = 'u8[4096]{0}', space=vmem, size = 0x1000, scoped, tag = 'output window, operand 0, single buffered']
    #allocation3 [shape = 's32[1]{0}', space=sflag, size = 0x4, scoped, tag = 'scoped memory for slp_forward.1']
    %8 = vsyncpa [#allocation3], 0
    // Predicated region
    $region2: #{slp_forward.1} parent=1 // pred_check
      _
    $region3: #{slp_forward.1} parent=1 // pred_check_branch
      %10 = sbr.rel (0) target = $region5
    $region4: #{slp_forward.1} parent=1 // pred_region
      _
    $region5: #{slp_forward.1} parent=1 // pred_fallthru
      _
    // Predicated region
    $region6: #{slp_forward.1} parent=1 // pred_check
      _
    $region7: #{slp_forward.1} parent=1 // pred_check_branch
      %12 = sbr.rel (0) target = $region9
    $region8: #{slp_forward.1} parent=1 // pred_region
      _
    $region9: #{slp_forward.1} parent=1 // pred_fallthru
      _
    // Predicated region
    $region10: #{slp_forward.1} parent=1 // pred_check
      _
    $region11: #{slp_forward.1} parent=1 // pred_check_branch
      %14 = sbr.rel (0) target = $region13
    $region12: #{slp_forward.1} parent=1 // pred_region
      _
    $region13: #{slp_forward.1} parent=1 // pred_fallthru
      _
    %v15 = vld [vmem:[%s0] sm:$0xff]
    %v16 = vld [vmem:[%s0 + $0x8] sm:$0xff]
    %v17 = vpack.c.bf16 %v15, %v15
    %v18 = vpack.c.bf16 %v16, %v16
    %v19 = vld [vmem:[%s1] sm:$0xf]
    %v20 = vld [vmem:[%s1 + $0x4] sm:$0xf]
    %v21 = vld [vmem:[%s1 + $0x8] sm:$0xf]
    %v22 = vld [vmem:[%s1 + $0xc] sm:$0xf]
    %v23 = vld [vmem:[%s1 + $0x10] sm:$0xf]
    %v24 = vld [vmem:[%s1 + $0x14] sm:$0xf]
    %v25 = vld [vmem:[%s1 + $0x18] sm:$0xf]
    %v26 = vld [vmem:[%s1 + $0x1c] sm:$0xf]
    %v27 = vld [vmem:[%s1 + $0x20] sm:$0xf]
    %v28 = vld [vmem:[%s1 + $0x24] sm:$0xf]
    %v29 = vld [vmem:[%s1 + $0x28] sm:$0xf]
    %v30 = vld [vmem:[%s1 + $0x2c] sm:$0xf]
    %v31 = vld [vmem:[%s1 + $0x30] sm:$0xf]
    %v32 = vld [vmem:[%s1 + $0x34] sm:$0xf]
    %v33 = vld [vmem:[%s1 + $0x38] sm:$0xf]
    %v34 = vld [vmem:[%s1 + $0x3c] sm:$0xf]
    %v35 = vld [vmem:[%s1 + $0x40] sm:$0xf]
    %v36 = vld [vmem:[%s1 + $0x44] sm:$0xf]
    %v37 = vld [vmem:[%s1 + $0x48] sm:$0xf]
    %v38 = vld [vmem:[%s1 + $0x4c] sm:$0xf]
    %v39 = vld [vmem:[%s1 + $0x50] sm:$0xf]
    %v40 = vld [vmem:[%s1 + $0x54] sm:$0xf]
    %v41 = vld [vmem:[%s1 + $0x58] sm:$0xf]
    %v42 = vld [vmem:[%s1 + $0x5c] sm:$0xf]
    %v43 = vld [vmem:[%s1 + $0x60] sm:$0xf]
    %v44 = vld [vmem:[%s1 + $0x64] sm:$0xf]
    %v45 = vld [vmem:[%s1 + $0x68] sm:$0xf]
    %v46 = vld [vmem:[%s1 + $0x6c] sm:$0xf]
    %v47 = vld [vmem:[%s1 + $0x70] sm:$0xf]
    %v48 = vld [vmem:[%s1 + $0x74] sm:$0xf]
    %v49 = vld [vmem:[%s1 + $0x78] sm:$0xf]
    %v50 = vld [vmem:[%s1 + $0x7c] sm:$0xf]
    %v51 = vld [vmem:[%s2] sm:$0x1]
    %v53 = vperm.slane %v51, 0
    %v87 = vunpack.c.l.b16 %v19
    %v88 = vunpack.c.l.b16 %v20
    %v89 = vunpack.c.l.b16 %v21
    %v90 = vunpack.c.l.b16 %v22
    %v91 = vunpack.c.l.b16 %v23
    %v92 = vunpack.c.l.b16 %v24
    %v93 = vunpack.c.l.b16 %v25
    %v94 = vunpack.c.l.b16 %v26
    %v95 = vunpack.c.l.b16 %v27
    %v96 = vunpack.c.l.b16 %v28
    %v97 = vunpack.c.l.b16 %v29
    %v98 = vunpack.c.l.b16 %v30
    %v99 = vunpack.c.l.b16 %v31
    %v100 = vunpack.c.l.b16 %v32
    %v101 = vunpack.c.l.b16 %v33
    %v102 = vunpack.c.l.b16 %v34
    %v103 = vunpack.c.l.b16 %v35
    %v104 = vunpack.c.l.b16 %v36
    %v105 = vunpack.c.l.b16 %v37
    %v106 = vunpack.c.l.b16 %v38
    %v107 = vunpack.c.l.b16 %v39
    %v108 = vunpack.c.l.b16 %v40
    %v109 = vunpack.c.l.b16 %v41
    %v110 = vunpack.c.l.b16 %v42
    %v111 = vunpack.c.l.b16 %v43
    %v112 = vunpack.c.l.b16 %v44
    %v113 = vunpack.c.l.b16 %v45
    %v114 = vunpack.c.l.b16 %v46
    %v115 = vunpack.c.l.b16 %v47
    %v116 = vunpack.c.l.b16 %v48
    %v117 = vunpack.c.l.b16 %v49
    %v118 = vunpack.c.l.b16 %v50
    %v119 = vpack.c.b16 %v88, %v87
    %v120 = vpack.c.b16 %v90, %v89
    %v121 = vpack.c.b16 %v92, %v91
    %v122 = vpack.c.b16 %v94, %v93
    %v123 = vpack.c.b16 %v96, %v95
    %v124 = vpack.c.b16 %v98, %v97
    %v125 = vpack.c.b16 %v100, %v99
    %v126 = vpack.c.b16 %v102, %v101
    %v127 = vpack.c.b16 %v104, %v103
    %v128 = vpack.c.b16 %v106, %v105
    %v129 = vpack.c.b16 %v108, %v107
    %v130 = vpack.c.b16 %v110, %v109
    %v131 = vpack.c.b16 %v112, %v111
    %v132 = vpack.c.b16 %v114, %v113
    %v133 = vpack.c.b16 %v116, %v115
    %v134 = vpack.c.b16 %v118, %v117
    %151 = vmatpush.bf16.msra.mxu0 %v126
    %152 = vmatpush.bf16.msra.mxu0 %v125
    %153 = vmatpush.bf16.msra.mxu0 %v124
    %154 = vmatpush.bf16.msra.mxu0 %v123
    %155 = vmatpush.bf16.msra.mxu0 %v122
    %156 = vmatpush.bf16.msra.mxu0 %v121
    %157 = vmatpush.bf16.msra.mxu0 %v120
    %158 = vmatpush.bf16.msra.mxu0 %v119
    %159 = vmatmul.bf16.gmra.mxu0 %v17
    %v160 = vpop.f32.mrf.mxu0
    %v161 = vadd.f32 %v53, %v160
    %v162 = vpop.f32.mrf.mxu0
    %163 = vdwg.mxu0
    %164 = vmatpush.bf16.msra.mxu0 %v134
    %165 = vmatpush.bf16.msra.mxu0 %v133
    %166 = vmatpush.bf16.msra.mxu0 %v132
    %167 = vmatpush.bf16.msra.mxu0 %v131
    %168 = vmatpush.bf16.msra.mxu0 %v130
    %169 = vmatpush.bf16.msra.mxu0 %v129
    %170 = vmatpush.bf16.msra.mxu0 %v128
    %171 = vmatpush.bf16.msra.mxu0 %v127
    %172 = vmatmul.bf16.gmra.mxu0 %v18
    %v173 = vpop.f32.mrf.mxu0
    %v174 = vadd.f32 %v161, %v173
    %v175 = vpop.f32.mrf.mxu0
    %176 = vdwg.mxu0
    %177 = vmax.xlane.f32.xlu0 %v174
    %v178 = vpop.xlane.xlu0 %177
    %v179 = vsub.f32 %v174, %v178
    %v180 = vmul.f32 %v179, 1.442695
    %v181 = vpow.pop %v180
    %182 = vadd.xlane.f32.xlu0 %v181
    %v183 = vpop.xlane.xlu0 %182
    %v184 = vlog2.pop %v183
    %v185 = vmul.f32 %v184, 0.6931472
    %v186 = vsub.f32 %v179, %v185
    %vm187 = vcmask 80896
    %188 = vst.msk [vmem:[#allocation2] sm:$0xff] %vm187, %v186
    // Predicated region
    $region14: #{slp_forward.1} parent=1 // pred_check
      _
    $region15: #{slp_forward.1} parent=1 // pred_check_branch
      %190 = sbr.rel (0) target = $region17
    $region16: #{slp_forward.1} parent=1 // pred_region
      %192 = vsyncadd [#allocation3], 0
      %s194 = sshll.u32 [#allocation2], 4
      %s195 = int_to_ptr.vmem [resolvable:$true] %s194
      %s196 = sshll.u32 %s3, 4
      %s197 = int_to_ptr.hbm [resolvable:$true] %s196
      %199 = dma.vmem_to_hbm [thread:$0]  %s195, 128, %s197, [#allocation3]
    $region17: #{slp_forward.1} parent=1 // pred_fallthru
      _
    // Predicated region
    $region18: #{slp_forward.1} parent=1 // pred_check
      _
    $region19: #{slp_forward.1} parent=1 // pred_check_branch
      %201 = sbr.rel (0) target = $region21
    $region20: #{slp_forward.1} parent=1 // pred_region
      %203 = dma.done [#allocation3], 128
    $region21: #{slp_forward.1} parent=1 // pred_fallthru
      _
    %204 = vsyncpa [#allocation3], 1

</llo_original>
